<compile_context>
chip_gen: v7x
topology: tpu7x:2x2x1
jax: 0.10.0
libtpu: 0.0.40
codegen_flags: <defaults>
</compile_context>

<pallas_src>
import jax
import jax.numpy as jnp
from jax import lax
from jax.experimental import pallas as pl
from jax.experimental.pallas import tpu as pltpu


def _embed_kernel(x_ref, w_ref, add_ref, out_ref):
    # x_ref:   (TB, n+1, patch_dim) bf16; row 0 of each image is zeros (cls).
    # w_ref:   (patch_dim, dim)     bf16; rows permuted to (c p1 p2) order.
    # add_ref: (n+1, dim)           f32;  row 0 = pos[0] + cls_token,
    #                                     rows 1..n = pos[1:] + bias.
    # out_ref: (TB, n+1, dim)       out_dtype.
    w = w_ref[...]
    add = add_ref[...]
    tb = x_ref.shape[0]

    def body(i, carry):
        emb = jnp.dot(x_ref[i], w, preferred_element_type=jnp.float32)
        out_ref[i] = (emb + add).astype(out_ref.dtype)   # one dense aligned store
        return carry

    lax.fori_loop(0, tb, body, 0, unroll=True)
    # dropout(p=0.0) is identity — nothing to do.


def _pick_batch_tile(b, n, patch_dim, dim, out_bytes, budget_bytes=24 << 20):
    """Largest divisor of b (<= 8) whose double-buffered blocks fit the budget,
    preferring >= 2 (and even) grid steps for megacore balance (esp. v7x)."""
    def vmem_bytes(tb):
        xb = tb * (n + 1) * patch_dim * 2          # bf16 input block
        ob = tb * (n + 1) * dim * out_bytes        # output block
        fixed = patch_dim * dim * 2 + (n + 1) * dim * 4   # w + addend
        return 2 * (xb + ob) + 2 * fixed           # worst-case double buffering

    divisors = [d for d in range(1, b + 1) if b % d == 0]
    candidates = [d for d in divisors if d <= 8 and vmem_bytes(d) <= budget_bytes]
    if not candidates:
        return 1
    for tb in sorted(candidates, reverse=True):    # prefer even step count >= 2
        steps = b // tb
        if steps >= 2 and steps % 2 == 0:
            return tb
    for tb in sorted(candidates, reverse=True):    # then any step count >= 2
        if b // tb >= 2:
            return tb
    return max(candidates)


def image_embedder(img, w, bias, cls_token, pos_embedding, *, patch_size,
                   compute_dtype=jnp.bfloat16, out_dtype=jnp.float32):
    """img: (b, 3, H, W) NCHW f32.
    w: (patch_dim, dim) — nn.Linear weight transposed, rows in the module's
       (p1 p2 c) order.  bias: (dim,).  cls_token: (1,1,dim).
       pos_embedding: (1, num_patches+1, dim).
    Returns (b, num_patches + 1, dim) in out_dtype (default f32)."""
    b, c, H, W = img.shape
    p = patch_size
    assert H % p == 0 and W % p == 0, "image dims must be divisible by patch"
    h, wgrid = H // p, W // p
    n = h * wgrid
    patch_dim = c * p * p
    dim = w.shape[1]
    if pos_embedding.shape[-2] != n + 1 or pos_embedding.shape[-1] != dim:
        raise ValueError(
            f"pos_embedding must have shape (..., {n + 1}, {dim}), got "
            f"{pos_embedding.shape}")

    # Patchify 'b c (h p1) (w p2) -> b (h w) (c p1 p2)'.  Cast to bf16 FIRST so
    # the XLA transpose/pad copy runs at 2 B/elem; keeping channels in front
    # keeps the innermost image dim (p2) contiguous (cheap copy).  The ordering
    # difference vs. the module's (p1 p2 c) is folded into a one-time weight-row
    # permutation below.
    # TODO(synk): gather patch rows inside the kernel with strided DMA
    # (memory_space=pl.ANY + manual make_async_copy into VMEM scratch) to drop
    # this extra HBM pass over the image entirely.
    x = img.astype(compute_dtype).reshape(b, c, h, p, wgrid, p)
    x = jnp.transpose(x, (0, 2, 4, 1, 3, 5))              # b h w c p1 p2
    patches = x.reshape(b, n, patch_dim)
    # Prepend a zero row per image: its matmul output is 0 and the cls token
    # arrives via the additive table, so all n+1 rows come from one matmul.
    patches = jnp.pad(patches, ((0, 0), (1, 0), (0, 0)))  # (b, n+1, patch_dim)

    # Weight rows (p1 p2 c) -> (c p1 p2), one-time permutation.
    w_perm = jnp.transpose(w.reshape(p, p, c, dim), (2, 0, 1, 3))
    w_perm = w_perm.reshape(patch_dim, dim).astype(compute_dtype)

    # Fold cls token, bias and positional embedding into one f32 addend.
    pos = pos_embedding.reshape(n + 1, dim).astype(jnp.float32)
    addend = jnp.concatenate(
        [pos[0:1] + cls_token.reshape(1, dim).astype(jnp.float32),
         pos[1:] + bias.reshape(1, dim).astype(jnp.float32)], axis=0)  # (n+1, dim)

    out_bytes = jnp.dtype(out_dtype).itemsize
    tb = _pick_batch_tile(b, n, patch_dim, dim, out_bytes)
    grid = (b // tb,)

    cost = pl.CostEstimate(
        flops=2 * b * (n + 1) * patch_dim * dim,
        transcendentals=0,
        bytes_accessed=(b * (n + 1) * patch_dim * 2            # bf16 patches
                        + patch_dim * dim * 2                   # bf16 weight
                        + (n + 1) * dim * 4                     # f32 addend
                        + b * (n + 1) * dim * out_bytes))       # output

    def build(single_buffer_invariants):
        inv_kwargs = {}
        if single_buffer_invariants:
            # Grid-invariant inputs (constant index_map): no re-DMA needed, so
            # a single buffer halves their VMEM footprint.
            inv_kwargs = dict(pipeline_mode=pl.Buffered(1))
        in_specs = [
            pl.BlockSpec((tb, n + 1, patch_dim), lambda i: (i, 0, 0)),
            pl.BlockSpec((patch_dim, dim), lambda i: (0, 0), **inv_kwargs),
            pl.BlockSpec((n + 1, dim), lambda i: (0, 0), **inv_kwargs),
        ]
        return pl.pallas_call(
            _embed_kernel,
            out_shape=jax.ShapeDtypeStruct((b, n + 1, dim), out_dtype),
            grid_spec=pltpu.PrefetchScalarGridSpec(
                num_scalar_prefetch=0,
                grid=grid,
                in_specs=in_specs,
                out_specs=pl.BlockSpec((tb, n + 1, dim), lambda i: (i, 0, 0)),
            ),
            compiler_params=pltpu.CompilerParams(
                dimension_semantics=("parallel",),       # both v7x TCs get work
                vmem_limit_bytes=48 * 1024 * 1024),      # above v5e's 16 MiB scope
            cost_estimate=cost,
        )

    try:
        return build(True)(patches, w_perm, addend)
    except Exception:
        # Fallback if this Pallas build rejects pipeline_mode=Buffered(1):
        # identical semantics, default double buffering.
        return build(False)(patches, w_perm, addend)


if __name__ == "__main__":
    # Small shapes consistent with the module: dim=32, image_size=16, patch=4.
    # (Toy scale is correctness-only; tune tiling at real ViT shapes.)
    dim = 32
    image_size = 16
    patch_size = 4
    batch = 2
    channels = 3
    num_patches = (image_size // patch_size) ** 2           # 16
    patch_dim = channels * patch_size ** 2                   # 48

    key = jax.random.PRNGKey(0)
    k_img, k_w, k_b, k_cls, k_pos = jax.random.split(key, 5)

    img = jax.random.normal(k_img, (batch, channels, image_size, image_size),
                            dtype=jnp.float32)
    # nn.Linear(patch_dim, dim): weight (dim, patch_dim); stored transposed
    # (patch_dim, dim), rows in the module's (p1 p2 c) order.
    w = jax.random.normal(k_w, (patch_dim, dim), dtype=jnp.float32) * 0.02
    bias = jax.random.normal(k_b, (dim,), dtype=jnp.float32) * 0.02
    cls_token = jax.random.normal(k_cls, (1, 1, dim), dtype=jnp.float32)
    pos_embedding = jax.random.normal(k_pos, (1, num_patches + 1, dim),
                                      dtype=jnp.float32)

    out = image_embedder(img, w, bias, cls_token, pos_embedding,
                         patch_size=patch_size)
    out = jax.block_until_ready(out)

    # Reference: exact PyTorch forward semantics ((p1 p2 c) order), all f32.
    h_ = image_size // patch_size
    xr = img.reshape(batch, channels, h_, patch_size, h_, patch_size)
    xr = jnp.transpose(xr, (0, 2, 4, 3, 5, 1)).reshape(batch, num_patches,
                                                       patch_dim)
    emb = xr @ w + bias
    cls = jnp.broadcast_to(cls_token, (batch, 1, dim))
    ref = jnp.concatenate([cls, emb], axis=1) + pos_embedding[:, :num_patches + 1]

    assert out.shape == (batch, num_patches + 1, dim)
    # bf16 matmul inputs (f32 accumulation) -> looser tolerance.
    assert jnp.allclose(out, ref, atol=1e-2, rtol=1e-2), float(
        jnp.max(jnp.abs(out - ref)))
    print("KERNEL_OK")
</pallas_src>

<mosaic_0001>
module attributes {stable_mosaic.version = 11 : i64} {
  func.func @_embed_kernel(%arg0: i32, %arg1: memref<1x17x48xbf16, #tpu.memory_space<vmem>>, %arg2: memref<48x32xbf16, #tpu.memory_space<vmem>>, %arg3: memref<17x32xf32, #tpu.memory_space<vmem>>, %arg4: memref<1x17x32xf32, #tpu.memory_space<vmem>>) attributes {dimension_semantics = [#tpu.dimension_semantics<parallel>], iteration_bounds = array<i64: 2>, scalar_prefetch = 0 : i64, scratch_operands = 0 : i64, tpu.core_type = #tpu.core_type<tc>, window_params = [{transform_indices = @transform_0, window_bounds = array<i64: 1, 17, 48>}, {pipeline_mode = #tpu.pipeline_mode<synchronous>, transform_indices = @transform_1, window_bounds = array<i64: 48, 32>}, {pipeline_mode = #tpu.pipeline_mode<synchronous>, transform_indices = @transform_2, window_bounds = array<i64: 17, 32>}, {transform_indices = @transform_3, window_bounds = array<i64: 1, 17, 32>}]} {
    %c0 = arith.constant 0 : index
    %c0_0 = arith.constant 0 : index
    %0 = vector.load %arg2[%c0, %c0_0] : memref<48x32xbf16, #tpu.memory_space<vmem>>, vector<48x32xbf16>
    %c0_1 = arith.constant 0 : index
    %c0_2 = arith.constant 0 : index
    %1 = vector.load %arg3[%c0_1, %c0_2] : memref<17x32xf32, #tpu.memory_space<vmem>>, vector<17x32xf32>
    %c0_i32 = arith.constant 0 : i32
    %2 = arith.index_cast %c0_i32 : i32 to index
    %c0_3 = arith.constant 0 : index
    %c0_4 = arith.constant 0 : index
    %3 = vector.load %arg1[%2, %c0_3, %c0_4] : memref<1x17x48xbf16, #tpu.memory_space<vmem>>, vector<1x17x48xbf16>
    %4 = vector.shape_cast %3 : vector<1x17x48xbf16> to vector<17x48xbf16>
    %cst = arith.constant dense<0.000000e+00> : vector<17x32xf32>
    %5 = tpu.matmul %4, %0, %cst {dimension_numbers = #tpu.dot_dimension_numbers<[1], [0], [0], [1], [0, 0, 1, 1], [], []>} : vector<17x48xbf16>, vector<48x32xbf16>, vector<17x32xf32> -> vector<17x32xf32>
    %6 = arith.addf %5, %1 : vector<17x32xf32>
    %7 = arith.index_cast %c0_i32 : i32 to index
    %c0_5 = arith.constant 0 : index
    %c0_6 = arith.constant 0 : index
    %8 = vector.load %arg4[%7, %c0_5, %c0_6] : memref<1x17x32xf32, #tpu.memory_space<vmem>>, vector<1x17x32xf32>
    %9 = vector.shape_cast %8 : vector<1x17x32xf32> to vector<17x32xf32>
    %10 = vector.shape_cast %6 : vector<17x32xf32> to vector<1x17x32xf32>
    tpu.vector_store %arg4[%7, %c0_5, %c0_6], %10 {strides = array<i32>} : memref<1x17x32xf32, #tpu.memory_space<vmem>>, vector<1x17x32xf32>,
    %c1_i32 = arith.constant 1 : i32
    return
  }
  func.func @transform_0(%arg0: i32) -> (i32, i32, i32) {
    %c0_i32 = arith.constant 0 : i32
    %c0_i32_0 = arith.constant 0 : i32
    %c0_i32_1 = arith.constant 0 : i32
    return %arg0, %c0_i32, %c0_i32_0 : i32, i32, i32
  }
  func.func @transform_1(%arg0: i32) -> (i32, i32) {
    %c0_i32 = arith.constant 0 : i32
    %c0_i32_0 = arith.constant 0 : i32
    %c0_i32_1 = arith.constant 0 : i32
    return %c0_i32, %c0_i32_0 : i32, i32
  }
  func.func @transform_2(%arg0: i32) -> (i32, i32) {
    %c0_i32 = arith.constant 0 : i32
    %c0_i32_0 = arith.constant 0 : i32
    %c0_i32_1 = arith.constant 0 : i32
    return %c0_i32, %c0_i32_0 : i32, i32
  }
  func.func @transform_3(%arg0: i32) -> (i32, i32, i32) {
    %c0_i32 = arith.constant 0 : i32
    %c0_i32_0 = arith.constant 0 : i32
    %c0_i32_1 = arith.constant 0 : i32
    return %arg0, %c0_i32, %c0_i32_0 : i32, i32, i32
  }
}

module attributes {stable_mosaic.version = 11 : i64} {
  func.func @_embed_kernel(%arg0: i32, %arg1: memref<1x17x48xbf16, #tpu.memory_space<vmem>>, %arg2: memref<48x32xbf16, #tpu.memory_space<vmem>>, %arg3: memref<17x32xf32, #tpu.memory_space<vmem>>, %arg4: memref<1x17x32xf32, #tpu.memory_space<vmem>>) attributes {dimension_semantics = [#tpu.dimension_semantics<parallel>], iteration_bounds = array<i64: 2>, scalar_prefetch = 0 : i64, scratch_operands = 0 : i64, tpu.core_type = #tpu.core_type<tc>, window_params = [{transform_indices = @transform_0, window_bounds = array<i64: 1, 17, 48>}, {pipeline_mode = #tpu.pipeline_mode<synchronous>, transform_indices = @transform_1, window_bounds = array<i64: 48, 32>}, {pipeline_mode = #tpu.pipeline_mode<synchronous>, transform_indices = @transform_2, window_bounds = array<i64: 17, 32>}, {transform_indices = @transform_3, window_bounds = array<i64: 1, 17, 32>}]} {
    %c0 = arith.constant 0 : index
    %c0_0 = arith.constant 0 : index
    %0 = vector.load %arg2[%c0, %c0_0] : memref<48x32xbf16, #tpu.memory_space<vmem>>, vector<48x32xbf16>
    %c0_1 = arith.constant 0 : index
    %c0_2 = arith.constant 0 : index
    %1 = vector.load %arg3[%c0_1, %c0_2] : memref<17x32xf32, #tpu.memory_space<vmem>>, vector<17x32xf32>
    %c0_i32 = arith.constant 0 : i32
    %2 = arith.index_cast %c0_i32 : i32 to index
    %c0_3 = arith.constant 0 : index
    %c0_4 = arith.constant 0 : index
    %3 = vector.load %arg1[%2, %c0_3, %c0_4] : memref<1x17x48xbf16, #tpu.memory_space<vmem>>, vector<1x17x48xbf16>
    %4 = vector.shape_cast %3 : vector<1x17x48xbf16> to vector<17x48xbf16>
    %cst = arith.constant dense<0.000000e+00> : vector<17x32xf32>
    %5 = tpu.matmul %4, %0, %cst {dimension_numbers = #tpu.dot_dimension_numbers<[1], [0], [0], [1], [0, 0, 1, 1], [], []>} : vector<17x48xbf16>, vector<48x32xbf16>, vector<17x32xf32> -> vector<17x32xf32>
    %6 = arith.addf %5, %1 : vector<17x32xf32>
    %7 = arith.index_cast %c0_i32 : i32 to index
    %c0_5 = arith.constant 0 : index
    %c0_6 = arith.constant 0 : index
    %8 = vector.load %arg4[%7, %c0_5, %c0_6] : memref<1x17x32xf32, #tpu.memory_space<vmem>>, vector<1x17x32xf32>
    %9 = vector.shape_cast %8 : vector<1x17x32xf32> to vector<17x32xf32>
    %10 = vector.shape_cast %6 : vector<17x32xf32> to vector<1x17x32xf32>
    tpu.vector_store %arg4[%7, %c0_5, %c0_6], %10 {strides = array<i32>} : memref<1x17x32xf32, #tpu.memory_space<vmem>>, vector<1x17x32xf32>,
    %c1_i32 = arith.constant 1 : i32
    return
  }
  func.func @transform_0(%arg0: i32) -> (i32, i32, i32) {
    %c0_i32 = arith.constant 0 : i32
    %c0_i32_0 = arith.constant 0 : i32
    %c0_i32_1 = arith.constant 0 : i32
    return %arg0, %c0_i32, %c0_i32_0 : i32, i32, i32
  }
  func.func @transform_1(%arg0: i32) -> (i32, i32) {
    %c0_i32 = arith.constant 0 : i32
    %c0_i32_0 = arith.constant 0 : i32
    %c0_i32_1 = arith.constant 0 : i32
    return %c0_i32, %c0_i32_0 : i32, i32
  }
  func.func @transform_2(%arg0: i32) -> (i32, i32) {
    %c0_i32 = arith.constant 0 : i32
    %c0_i32_0 = arith.constant 0 : i32
    %c0_i32_1 = arith.constant 0 : i32
    return %c0_i32, %c0_i32_0 : i32, i32
  }
  func.func @transform_3(%arg0: i32) -> (i32, i32, i32) {
    %c0_i32 = arith.constant 0 : i32
    %c0_i32_0 = arith.constant 0 : i32
    %c0_i32_1 = arith.constant 0 : i32
    return %arg0, %c0_i32, %c0_i32_0 : i32, i32, i32
  }
}

</mosaic_0001>

<llo_original>
// kernel: tpu_custom_call.1
$region0: #{tpu_custom_call.1}
  #allocation0 [shape = 'u32[]', space=smem, size = 0x4, offset = 0x4, fixed_abs, tag = 'smem constant byte address 0x4 - core index']
  #allocation1 [shape = 'u32[144,128]{1,0:T(1,128)}', space=vmem, size = 0x12000, scoped, tag = 'internal scratch']
  %s0 = inlined_call_operand.vmem [shape: bf16[2,17,48], index: 0, kind: input, shape index: {}]
  %s1 = inlined_call_operand.vmem [shape: bf16[48,32], index: 1, kind: input, shape index: {}]
  %s2 = inlined_call_operand.vmem [shape: f32[17,32], index: 2, kind: input, shape index: {}]
  %s3 = inlined_call_operand.vmem [shape: f32[2,17,32], index: 3, kind: output, shape index: {}]
  %s4 = sld [smem:[#allocation0]]
  $region45: #{tpu_custom_call.1} parent=0
    _
  %s6 = ssub.s32 1, %s4
  %s7 = scalar_select 0, %s6, %s4
  loop: start=0, step=1, limit=4
  $region2: #{tpu_custom_call.1} parent=0 // loop_pre_header
    _
  $region3: #{tpu_custom_call.1} parent=0 // loop_header
    %s9 = sphi 0, %s13
    %p10 = scmp.ge.s32.totalorder %s9, 4
    %s19 = sphi 0, %s21
    %s22 = sphi 0, %s19
    %s23 = sphi 0, %s22
    %s39 = sphi 0, %s23
    %s43 = sphi 0, %s43
    %s45 = sphi 0, %s43
    %s46 = sphi 0, %s45
    %s60 = sphi 0, %s46
    %s64 = sphi 0, %s64
    %s66 = sphi 0, %s64
    %s67 = sphi 0, %s66
    %s81 = sphi 0, %s67
    %s87 = sphi 0, %s89
    %s90 = sphi 0, %s87
    %s91 = sphi 0, %s90
    %s107 = sphi 0, %s91
  $region4: #{tpu_custom_call.1} parent=0 // loop_header_branch
    %12 = sbr.rel (%p10) target = $region8
  $region5: #{tpu_custom_call.1} parent=0 // loop_body
    %s14 = ssub.s32 %s9, 1
    %s15 = ssub.s32 %s9, 2
    %s16 = sadd.s32 %s9, 1
    %s17 = ssub.s32 %s9, %s16
    %p18 = scmp.eq.s32.totalorder %s17, 0
    %s20 = sadd.s32 %s19, 1
    %s21 = scalar_select %p18, %s19, %s20
    %p24 = pneg %p18
    %p25 = scmp.eq.s32.totalorder %s9, 1
    %p26 = por %p24, %p25
    %p27 = scmp.ne.s32.totalorder %s19, %s22
    %p28 = scmp.eq.s32.totalorder %s9, 0
    %p29 = por %p27, %p28
    %p30 = scmp.ne.s32.totalorder %s19, %s22
    %p31 = scmp.eq.s32.totalorder %s14, 1
    %p32 = por %p30, %p31
    %p33 = scmp.ne.s32.totalorder %s22, %s23
    %p34 = scmp.eq.s32.totalorder %s14, 0
    %p35 = por %p33, %p34
    %p36 = scmp.ne.s32.totalorder %s22, %s23
    %p37 = scmp.eq.s32.totalorder %s15, 1
    %p38 = por %p36, %p37
    %p40 = scmp.ne.s32.totalorder %s23, %s39
    %p41 = scmp.eq.s32.totalorder %s15, 0
    %p42 = por %p40, %p41
    %s44 = sadd.s32 %s43, 1
    %p47 = scmp.eq.s32.totalorder %s9, 1
    %p48 = scmp.ne.s32.totalorder %s43, %s45
    %p49 = scmp.eq.s32.totalorder %s9, 0
    %p50 = por %p48, %p49
    %p51 = scmp.ne.s32.totalorder %s43, %s45
    %p52 = scmp.eq.s32.totalorder %s14, 1
    %p53 = por %p51, %p52
    %p54 = scmp.ne.s32.totalorder %s45, %s46
    %p55 = scmp.eq.s32.totalorder %s14, 0
    %p56 = por %p54, %p55
    %p57 = scmp.ne.s32.totalorder %s45, %s46
    %p58 = scmp.eq.s32.totalorder %s15, 1
    %p59 = por %p57, %p58
    %p61 = scmp.ne.s32.totalorder %s46, %s60
    %p62 = scmp.eq.s32.totalorder %s15, 0
    %p63 = por %p61, %p62
    %s65 = sadd.s32 %s64, 1
    %p68 = scmp.eq.s32.totalorder %s9, 1
    %p69 = scmp.ne.s32.totalorder %s64, %s66
    %p70 = scmp.eq.s32.totalorder %s9, 0
    %p71 = por %p69, %p70
    %p72 = scmp.ne.s32.totalorder %s64, %s66
    %p73 = scmp.eq.s32.totalorder %s14, 1
    %p74 = por %p72, %p73
    %p75 = scmp.ne.s32.totalorder %s66, %s67
    %p76 = scmp.eq.s32.totalorder %s14, 0
    %p77 = por %p75, %p76
    %p78 = scmp.ne.s32.totalorder %s66, %s67
    %p79 = scmp.eq.s32.totalorder %s15, 1
    %p80 = por %p78, %p79
    %p82 = scmp.ne.s32.totalorder %s67, %s81
    %p83 = scmp.eq.s32.totalorder %s15, 0
    %p84 = por %p82, %p83
    %s85 = ssub.s32 %s9, %s16
    %p86 = scmp.eq.s32.totalorder %s85, 0
    %s88 = sadd.s32 %s87, 1
    %s89 = scalar_select %p86, %s87, %s88
    %p92 = pneg %p86
    %p93 = scmp.eq.s32.totalorder %s9, 1
    %p94 = por %p92, %p93
    %p95 = scmp.ne.s32.totalorder %s87, %s90
    %p96 = scmp.eq.s32.totalorder %s9, 0
    %p97 = por %p95, %p96
    %p98 = scmp.ne.s32.totalorder %s87, %s90
    %p99 = scmp.eq.s32.totalorder %s14, 1
    %p100 = por %p98, %p99
    %p101 = scmp.ne.s32.totalorder %s90, %s91
    %p102 = scmp.eq.s32.totalorder %s14, 0
    %p103 = por %p101, %p102
    %p104 = scmp.ne.s32.totalorder %s90, %s91
    %p105 = scmp.eq.s32.totalorder %s15, 1
    %p106 = por %p104, %p105
    %p108 = scmp.ne.s32.totalorder %s91, %s107
    %p109 = scmp.eq.s32.totalorder %s15, 0
    %p110 = por %p108, %p109
    %p111 = scmp.le.s32.totalorder 1, %s9
    %p112 = scmp.lt.s32.totalorder %s9, 3
    %p113 = pnand %p111, %p112
    %p114 = pneg %p113
    // Predicated region
    $region9: #{tpu_custom_call.1} parent=5 // pred_check
      _
    $region10: #{tpu_custom_call.1} parent=5 // pred_check_branch
      %116 = sbr.rel (%p113) target = $region12
    $region11: #{tpu_custom_call.1} parent=5 // pred_region
      %s117 = ssub.s32 %s9, 1
      // Predicated region
      $region13: #{tpu_custom_call.1} parent=11 // pred_check
        %p118 = pneg %p56
      $region14: #{tpu_custom_call.1} parent=11 // pred_check_branch
        %120 = sbr.rel (%p118) target = $region16
      $region15: #{tpu_custom_call.1} parent=11 // pred_region
        _
      $region16: #{tpu_custom_call.1} parent=11 // pred_fallthru
        _
      // Predicated region
      $region17: #{tpu_custom_call.1} parent=11 // pred_check
        %p121 = pneg %p77
      $region18: #{tpu_custom_call.1} parent=11 // pred_check_branch
        %123 = sbr.rel (%p121) target = $region20
      $region19: #{tpu_custom_call.1} parent=11 // pred_region
        _
      $region20: #{tpu_custom_call.1} parent=11 // pred_fallthru
        _
    $region12: #{tpu_custom_call.1} parent=5 // pred_fallthru
      _
    %p124 = scmp.lt.s32.totalorder %s9, 2
    // Predicated region
    $region21: #{tpu_custom_call.1} parent=5 // pred_check
      %p125 = pneg %p124
    $region22: #{tpu_custom_call.1} parent=5 // pred_check_branch
      %127 = sbr.rel (%p125) target = $region24
    $region23: #{tpu_custom_call.1} parent=5 // pred_region
      // Predicated region
      $region25: #{tpu_custom_call.1} parent=23 // pred_check
        %p128 = pneg %p29
      $region26: #{tpu_custom_call.1} parent=23 // pred_check_branch
        %130 = sbr.rel (%p128) target = $region28
      $region27: #{tpu_custom_call.1} parent=23 // pred_region
        %p131 = scmp.lt.s32.totalorder %s9, 1
        %s132 = scalar_select %p131, %s9, 1
        %s133 = smul.addr %s132, 3
        %s134 = smul.addr %s133, 4
        %s135 = scalar_lea.vmem %s0, %s134
      $region28: #{tpu_custom_call.1} parent=23 // pred_fallthru
        _
    $region24: #{tpu_custom_call.1} parent=5 // pred_fallthru
      _
    %p136 = scmp.le.s32.totalorder 1, %s9
    %p137 = scmp.lt.s32.totalorder %s9, 3
    %p138 = pnand %p136, %p137
    %p139 = pneg %p138
    // Predicated region
    $region29: #{tpu_custom_call.1} parent=5 // pred_check
      _
    $region30: #{tpu_custom_call.1} parent=5 // pred_check_branch
      %141 = sbr.rel (%p138) target = $region32
    $region31: #{tpu_custom_call.1} parent=5 // pred_region
      %s142 = ssub.s32 %s9, 1
      %p143 = scmp.lt.s32.totalorder %s14, 1
      %s144 = scalar_select %p143, %s14, 1
      %s145 = smul.addr %s144, 3
      %s146 = smul.addr %s145, 4
      %s147 = scalar_lea.vmem %s0, %s146
      %p148 = pneg %p35
      %p149 = pneg %p32
      %p150 = pneg %p56
      %p151 = pneg %p53
      %p152 = pneg %p77
      %p153 = pneg %p74
      %p154 = pneg %p103
      %p155 = pneg %p100
      %p156 = scmp.lt.s32.totalorder %s14, 1
      %s157 = scalar_select %p156, %s14, 1
      %s158 = smul.addr %s157, 3
      %s159 = smul.addr %s158, 8
      %s160 = scalar_lea.vmem %s3, %s159
      %p161 = scmp.lt.s32.totalorder %s14, 1
      %s162 = scalar_select %p161, %s14, 1
      %s163 = smul.addr %s162, 3
      %s164 = smul.addr %s163, 4
      %s165 = scalar_lea.vmem %s0, %s164
      %p166 = scmp.lt.s32.totalorder %s14, 1
      %s167 = scalar_select %p166, %s14, 1
      %s168 = smul.addr %s167, 3
      %s169 = smul.addr %s168, 8
      %s170 = scalar_lea.vmem %s3, %s169
      %v172 = vld [vmem:[%s1] sm:$0xf]
      %v173 = vld [vmem:[%s1 + $0x4] sm:$0xf]
      %v174 = vld [vmem:[%s1 + $0x8] sm:$0xf]
      %v175 = vld [vmem:[%s1 + $0xc] sm:$0xf]
      %v176 = vld [vmem:[%s1 + $0x10] sm:$0xf]
      %v177 = vld [vmem:[%s1 + $0x14] sm:$0xf]
      %v178 = vld [vmem:[%s2] sm:$0xff]
      %v179 = vld [vmem:[%s2 + $0x8] sm:$0xff]
      %v180 = vld [vmem:[%s2 + $0x10] sm:$0x1]
      %v181 = vld [vmem:[%s165] sm:$0xf]
      %v182 = vld [vmem:[%s165 + $0x4] sm:$0xf]
      %v183 = vld [vmem:[%s165 + $0x8] sm:$0x1]
      %v187 = vunpack.c.l.b16 %v181
      %v188 = vunpack.c.l.b16 %v182
      %v189 = vunpack.c.l.b16 %v183
      %v190 = vpack.c.b16 %v188, %v187
      %v191 = vpack.c.b16 %v189, %v189
      %v198 = vunpack.c.l.b16 %v172
      %v199 = vunpack.c.l.b16 %v173
      %v200 = vunpack.c.l.b16 %v174
      %v201 = vunpack.c.l.b16 %v175
      %v202 = vunpack.c.l.b16 %v176
      %v203 = vunpack.c.l.b16 %v177
      %v204 = vpack.c.b16 %v199, %v198
      %v205 = vpack.c.b16 %v201, %v200
      %v206 = vpack.c.b16 %v203, %v202
      %vm210 = vcmask 392192
      %v212 = vsel %vm210, %v190, 0
      %v215 = vsel %vm210, %v191, 0
      %217 = vmatprep.subr.bf16.mxu0 0
      %218 = vmatpush1.bf16.msra.mxu0 %v204
      %219 = vmatprep.subr.bf16.mxu0 0
      %220 = vmatpush1.bf16.msra.mxu0 %v205
      %221 = vmatprep.subr.bf16.mxu0 0
      %222 = vmatpush1.bf16.msra.mxu0 %v206
      %223 = vmatprep.subr.bf16.mxu0 0
      %224 = vmatpush1.bf16.msra.mxu0 0
      %225 = vmatprep.subr.bf16.mxu0 0
      %226 = vmatpush1.bf16.msra.mxu0 0
      %227 = vmatprep.subr.bf16.mxu0 0
      %228 = vmatpush1.bf16.msra.mxu0 0
      %229 = vmatprep.subr.bf16.mxu0 0
      %230 = vmatpush1.bf16.msra.mxu0 0
      %231 = vmatprep.subr.bf16.mxu0 0
      %232 = vmatpush1.bf16.msra.mxu0 0
      %233 = vmatprep.subr.bf16.mxu0 0
      %234 = vmatpush1.bf16.msra.mxu0 0
      %235 = vmatprep.subr.bf16.mxu0 0
      %236 = vmatpush1.bf16.msra.mxu0 0
      %237 = vmatprep.subr.bf16.mxu0 0
      %238 = vmatpush1.bf16.msra.mxu0 0
      %239 = vmatprep.subr.bf16.mxu0 0
      %240 = vmatpush1.bf16.msra.mxu0 0
      %241 = vmatprep.subr.bf16.mxu0 0
      %242 = vmatpush1.bf16.msra.mxu0 0
      %243 = vmatprep.subr.bf16.mxu0 0
      %244 = vmatpush1.bf16.msra.mxu0 0
      %245 = vmatprep.subr.bf16.mxu0 0
      %246 = vmatpush1.bf16.msra.mxu0 0
      %247 = vmatprep.subr.bf16.mxu0 0
      %248 = vmatpush1.bf16.msra.mxu0 0
      %249 = vmatprep.mubr.bf16.mxu0 0
      %250 = vmatmul.mubr.bf16.gmra.mrb[0].mxu0 %v212
      %v251 = vpop.f32.mrb[0].mxu0
      %v252 = vadd.f32 %v178, %v251
      %v253 = vpop.f32.mrb[0].mxu0
      %v254 = vpop.f32.mrb[0].mxu0
      %v255 = vadd.f32 %v179, %v254
      %v256 = vpop.f32.mrb[0].mxu0
      %257 = vmatprep.mubr.bf16.mxu0 0
      %258 = vmatmul.mubr.bf16.gmra.mrb[0].mxu0 %v215
      %v259 = vpop.f32.mrb[0].mxu0
      %v260 = vadd.f32 %v180, %v259
      %v261 = vpop.f32.mrb[0].mxu0
      %v262 = vpop.f32.mrb[0].mxu0
      %v263 = vpop.f32.mrb[0].mxu0
      %264 = vdwg.mxu0
      %vm265 = vcmask 261120
      %266 = vst.msk [vmem:[%s170] sm:$0xff] %vm265, %v252
      %267 = vst.msk [vmem:[%s170 + $0x8] sm:$0xff] %vm265, %v255
      %vm268 = vcmask 253952
      %269 = vst.msk [vmem:[%s170 + $0x10] sm:$0x1] %vm268, %v260
      %p270 = scmp.lt.s32.totalorder %s14, 1
      %s271 = scalar_select %p270, %s14, 1
      %s272 = smul.addr %s271, 3
      %s273 = smul.addr %s272, 8
      %s274 = scalar_lea.vmem %s3, %s273
      // Predicated region
      $region33: #{tpu_custom_call.1} parent=31 // pred_check
        %p275 = pneg %p100
      $region34: #{tpu_custom_call.1} parent=31 // pred_check_branch
        %277 = sbr.rel (%p275) target = $region36
      $region35: #{tpu_custom_call.1} parent=31 // pred_region
        _
      $region36: #{tpu_custom_call.1} parent=31 // pred_fallthru
        _
    $region32: #{tpu_custom_call.1} parent=5 // pred_fallthru
      _
    %p278 = scmp.le.s32.totalorder 2, %s9
    // Predicated region
    $region37: #{tpu_custom_call.1} parent=5 // pred_check
      %p279 = pneg %p278
    $region38: #{tpu_custom_call.1} parent=5 // pred_check_branch
      %281 = sbr.rel (%p279) target = $region40
    $region39: #{tpu_custom_call.1} parent=5 // pred_region
      %s282 = ssub.s32 %s9, 2
      // Predicated region
      $region41: #{tpu_custom_call.1} parent=39 // pred_check
        %p283 = pneg %p106
      $region42: #{tpu_custom_call.1} parent=39 // pred_check_branch
        %285 = sbr.rel (%p283) target = $region44
      $region43: #{tpu_custom_call.1} parent=39 // pred_region
        %p286 = scmp.lt.s32.totalorder %s15, 1
        %s287 = scalar_select %p286, %s15, 1
        %s288 = smul.addr %s287, 3
        %s289 = smul.addr %s288, 8
        %s290 = scalar_lea.vmem %s3, %s289
      $region44: #{tpu_custom_call.1} parent=39 // pred_fallthru
        _
    $region40: #{tpu_custom_call.1} parent=5 // pred_fallthru
      _
  $region6: #{tpu_custom_call.1} parent=0 // loop_footer
    %s13 = sadd.s32 1, %s9
  $region7: #{tpu_custom_call.1} parent=0 // loop_footer_branch
    %8 = sbr.rel target = $region3
  $region8: #{tpu_custom_call.1} parent=0 // loop_exit
    _

// kernel: tpu_custom_call.1
$region0: #{tpu_custom_call.1}
  #allocation0 [shape = 'u32[]', space=smem, size = 0x4, offset = 0x4, fixed_abs, tag = 'smem constant byte address 0x4 - core index']
  #allocation1 [shape = 'u32[144,128]{1,0:T(1,128)}', space=vmem, size = 0x12000, scoped, tag = 'internal scratch']
  %s0 = inlined_call_operand.vmem [shape: bf16[2,17,48], index: 0, kind: input, shape index: {}]
  %s1 = inlined_call_operand.vmem [shape: bf16[48,32], index: 1, kind: input, shape index: {}]
  %s2 = inlined_call_operand.vmem [shape: f32[17,32], index: 2, kind: input, shape index: {}]
  %s3 = inlined_call_operand.vmem [shape: f32[2,17,32], index: 3, kind: output, shape index: {}]
  %s4 = sld [smem:[#allocation0]]
  $region45: #{tpu_custom_call.1} parent=0
    _
  %s6 = ssub.s32 1, %s4
  %s7 = scalar_select 0, %s6, %s4
  loop: start=0, step=1, limit=4
  $region2: #{tpu_custom_call.1} parent=0 // loop_pre_header
    _
  $region3: #{tpu_custom_call.1} parent=0 // loop_header
    %s9 = sphi 0, %s13
    %p10 = scmp.ge.s32.totalorder %s9, 4
    %s19 = sphi 0, %s21
    %s22 = sphi 0, %s19
    %s23 = sphi 0, %s22
    %s39 = sphi 0, %s23
    %s43 = sphi 0, %s43
    %s45 = sphi 0, %s43
    %s46 = sphi 0, %s45
    %s60 = sphi 0, %s46
    %s64 = sphi 0, %s64
    %s66 = sphi 0, %s64
    %s67 = sphi 0, %s66
    %s81 = sphi 0, %s67
    %s87 = sphi 0, %s89
    %s90 = sphi 0, %s87
    %s91 = sphi 0, %s90
    %s107 = sphi 0, %s91
  $region4: #{tpu_custom_call.1} parent=0 // loop_header_branch
    %12 = sbr.rel (%p10) target = $region8
  $region5: #{tpu_custom_call.1} parent=0 // loop_body
    %s14 = ssub.s32 %s9, 1
    %s15 = ssub.s32 %s9, 2
    %s16 = sadd.s32 %s9, 1
    %s17 = ssub.s32 %s9, %s16
    %p18 = scmp.eq.s32.totalorder %s17, 0
    %s20 = sadd.s32 %s19, 1
    %s21 = scalar_select %p18, %s19, %s20
    %p24 = pneg %p18
    %p25 = scmp.eq.s32.totalorder %s9, 1
    %p26 = por %p24, %p25
    %p27 = scmp.ne.s32.totalorder %s19, %s22
    %p28 = scmp.eq.s32.totalorder %s9, 0
    %p29 = por %p27, %p28
    %p30 = scmp.ne.s32.totalorder %s19, %s22
    %p31 = scmp.eq.s32.totalorder %s14, 1
    %p32 = por %p30, %p31
    %p33 = scmp.ne.s32.totalorder %s22, %s23
    %p34 = scmp.eq.s32.totalorder %s14, 0
    %p35 = por %p33, %p34
    %p36 = scmp.ne.s32.totalorder %s22, %s23
    %p37 = scmp.eq.s32.totalorder %s15, 1
    %p38 = por %p36, %p37
    %p40 = scmp.ne.s32.totalorder %s23, %s39
    %p41 = scmp.eq.s32.totalorder %s15, 0
    %p42 = por %p40, %p41
    %s44 = sadd.s32 %s43, 1
    %p47 = scmp.eq.s32.totalorder %s9, 1
    %p48 = scmp.ne.s32.totalorder %s43, %s45
    %p49 = scmp.eq.s32.totalorder %s9, 0
    %p50 = por %p48, %p49
    %p51 = scmp.ne.s32.totalorder %s43, %s45
    %p52 = scmp.eq.s32.totalorder %s14, 1
    %p53 = por %p51, %p52
    %p54 = scmp.ne.s32.totalorder %s45, %s46
    %p55 = scmp.eq.s32.totalorder %s14, 0
    %p56 = por %p54, %p55
    %p57 = scmp.ne.s32.totalorder %s45, %s46
    %p58 = scmp.eq.s32.totalorder %s15, 1
    %p59 = por %p57, %p58
    %p61 = scmp.ne.s32.totalorder %s46, %s60
    %p62 = scmp.eq.s32.totalorder %s15, 0
    %p63 = por %p61, %p62
    %s65 = sadd.s32 %s64, 1
    %p68 = scmp.eq.s32.totalorder %s9, 1
    %p69 = scmp.ne.s32.totalorder %s64, %s66
    %p70 = scmp.eq.s32.totalorder %s9, 0
    %p71 = por %p69, %p70
    %p72 = scmp.ne.s32.totalorder %s64, %s66
    %p73 = scmp.eq.s32.totalorder %s14, 1
    %p74 = por %p72, %p73
    %p75 = scmp.ne.s32.totalorder %s66, %s67
    %p76 = scmp.eq.s32.totalorder %s14, 0
    %p77 = por %p75, %p76
    %p78 = scmp.ne.s32.totalorder %s66, %s67
    %p79 = scmp.eq.s32.totalorder %s15, 1
    %p80 = por %p78, %p79
    %p82 = scmp.ne.s32.totalorder %s67, %s81
    %p83 = scmp.eq.s32.totalorder %s15, 0
    %p84 = por %p82, %p83
    %s85 = ssub.s32 %s9, %s16
    %p86 = scmp.eq.s32.totalorder %s85, 0
    %s88 = sadd.s32 %s87, 1
    %s89 = scalar_select %p86, %s87, %s88
    %p92 = pneg %p86
    %p93 = scmp.eq.s32.totalorder %s9, 1
    %p94 = por %p92, %p93
    %p95 = scmp.ne.s32.totalorder %s87, %s90
    %p96 = scmp.eq.s32.totalorder %s9, 0
    %p97 = por %p95, %p96
    %p98 = scmp.ne.s32.totalorder %s87, %s90
    %p99 = scmp.eq.s32.totalorder %s14, 1
    %p100 = por %p98, %p99
    %p101 = scmp.ne.s32.totalorder %s90, %s91
    %p102 = scmp.eq.s32.totalorder %s14, 0
    %p103 = por %p101, %p102
    %p104 = scmp.ne.s32.totalorder %s90, %s91
    %p105 = scmp.eq.s32.totalorder %s15, 1
    %p106 = por %p104, %p105
    %p108 = scmp.ne.s32.totalorder %s91, %s107
    %p109 = scmp.eq.s32.totalorder %s15, 0
    %p110 = por %p108, %p109
    %p111 = scmp.le.s32.totalorder 1, %s9
    %p112 = scmp.lt.s32.totalorder %s9, 3
    %p113 = pnand %p111, %p112
    %p114 = pneg %p113
    // Predicated region
    $region9: #{tpu_custom_call.1} parent=5 // pred_check
      _
    $region10: #{tpu_custom_call.1} parent=5 // pred_check_branch
      %116 = sbr.rel (%p113) target = $region12
    $region11: #{tpu_custom_call.1} parent=5 // pred_region
      %s117 = ssub.s32 %s9, 1
      // Predicated region
      $region13: #{tpu_custom_call.1} parent=11 // pred_check
        %p118 = pneg %p56
      $region14: #{tpu_custom_call.1} parent=11 // pred_check_branch
        %120 = sbr.rel (%p118) target = $region16
      $region15: #{tpu_custom_call.1} parent=11 // pred_region
        _
      $region16: #{tpu_custom_call.1} parent=11 // pred_fallthru
        _
      // Predicated region
      $region17: #{tpu_custom_call.1} parent=11 // pred_check
        %p121 = pneg %p77
      $region18: #{tpu_custom_call.1} parent=11 // pred_check_branch
        %123 = sbr.rel (%p121) target = $region20
      $region19: #{tpu_custom_call.1} parent=11 // pred_region
        _
      $region20: #{tpu_custom_call.1} parent=11 // pred_fallthru
        _
    $region12: #{tpu_custom_call.1} parent=5 // pred_fallthru
      _
    %p124 = scmp.lt.s32.totalorder %s9, 2
    // Predicated region
    $region21: #{tpu_custom_call.1} parent=5 // pred_check
      %p125 = pneg %p124
    $region22: #{tpu_custom_call.1} parent=5 // pred_check_branch
      %127 = sbr.rel (%p125) target = $region24
    $region23: #{tpu_custom_call.1} parent=5 // pred_region
      // Predicated region
      $region25: #{tpu_custom_call.1} parent=23 // pred_check
        %p128 = pneg %p29
      $region26: #{tpu_custom_call.1} parent=23 // pred_check_branch
        %130 = sbr.rel (%p128) target = $region28
      $region27: #{tpu_custom_call.1} parent=23 // pred_region
        %p131 = scmp.lt.s32.totalorder %s9, 1
        %s132 = scalar_select %p131, %s9, 1
        %s133 = smul.addr %s132, 3
        %s134 = smul.addr %s133, 4
        %s135 = scalar_lea.vmem %s0, %s134
      $region28: #{tpu_custom_call.1} parent=23 // pred_fallthru
        _
    $region24: #{tpu_custom_call.1} parent=5 // pred_fallthru
      _
    %p136 = scmp.le.s32.totalorder 1, %s9
    %p137 = scmp.lt.s32.totalorder %s9, 3
    %p138 = pnand %p136, %p137
    %p139 = pneg %p138
    // Predicated region
    $region29: #{tpu_custom_call.1} parent=5 // pred_check
      _
    $region30: #{tpu_custom_call.1} parent=5 // pred_check_branch
      %141 = sbr.rel (%p138) target = $region32
    $region31: #{tpu_custom_call.1} parent=5 // pred_region
      %s142 = ssub.s32 %s9, 1
      %p143 = scmp.lt.s32.totalorder %s14, 1
      %s144 = scalar_select %p143, %s14, 1
      %s145 = smul.addr %s144, 3
      %s146 = smul.addr %s145, 4
      %s147 = scalar_lea.vmem %s0, %s146
      %p148 = pneg %p35
      %p149 = pneg %p32
      %p150 = pneg %p56
      %p151 = pneg %p53
      %p152 = pneg %p77
      %p153 = pneg %p74
      %p154 = pneg %p103
      %p155 = pneg %p100
      %p156 = scmp.lt.s32.totalorder %s14, 1
      %s157 = scalar_select %p156, %s14, 1
      %s158 = smul.addr %s157, 3
      %s159 = smul.addr %s158, 8
      %s160 = scalar_lea.vmem %s3, %s159
      %p161 = scmp.lt.s32.totalorder %s14, 1
      %s162 = scalar_select %p161, %s14, 1
      %s163 = smul.addr %s162, 3
      %s164 = smul.addr %s163, 4
      %s165 = scalar_lea.vmem %s0, %s164
      %p166 = scmp.lt.s32.totalorder %s14, 1
      %s167 = scalar_select %p166, %s14, 1
      %s168 = smul.addr %s167, 3
      %s169 = smul.addr %s168, 8
      %s170 = scalar_lea.vmem %s3, %s169
      %v172 = vld [vmem:[%s1] sm:$0xf]
      %v173 = vld [vmem:[%s1 + $0x4] sm:$0xf]
      %v174 = vld [vmem:[%s1 + $0x8] sm:$0xf]
      %v175 = vld [vmem:[%s1 + $0xc] sm:$0xf]
      %v176 = vld [vmem:[%s1 + $0x10] sm:$0xf]
      %v177 = vld [vmem:[%s1 + $0x14] sm:$0xf]
      %v178 = vld [vmem:[%s2] sm:$0xff]
      %v179 = vld [vmem:[%s2 + $0x8] sm:$0xff]
      %v180 = vld [vmem:[%s2 + $0x10] sm:$0x1]
      %v181 = vld [vmem:[%s165] sm:$0xf]
      %v182 = vld [vmem:[%s165 + $0x4] sm:$0xf]
      %v183 = vld [vmem:[%s165 + $0x8] sm:$0x1]
      %v187 = vunpack.c.l.b16 %v181
      %v188 = vunpack.c.l.b16 %v182
      %v189 = vunpack.c.l.b16 %v183
      %v190 = vpack.c.b16 %v188, %v187
      %v191 = vpack.c.b16 %v189, %v189
      %v198 = vunpack.c.l.b16 %v172
      %v199 = vunpack.c.l.b16 %v173
      %v200 = vunpack.c.l.b16 %v174
      %v201 = vunpack.c.l.b16 %v175
      %v202 = vunpack.c.l.b16 %v176
      %v203 = vunpack.c.l.b16 %v177
      %v204 = vpack.c.b16 %v199, %v198
      %v205 = vpack.c.b16 %v201, %v200
      %v206 = vpack.c.b16 %v203, %v202
      %vm210 = vcmask 392192
      %v212 = vsel %vm210, %v190, 0
      %v215 = vsel %vm210, %v191, 0
      %217 = vmatprep.subr.bf16.mxu0 0
      %218 = vmatpush1.bf16.msra.mxu0 %v204
      %219 = vmatprep.subr.bf16.mxu0 0
      %220 = vmatpush1.bf16.msra.mxu0 %v205
      %221 = vmatprep.subr.bf16.mxu0 0
      %222 = vmatpush1.bf16.msra.mxu0 %v206
      %223 = vmatprep.subr.bf16.mxu0 0
      %224 = vmatpush1.bf16.msra.mxu0 0
      %225 = vmatprep.subr.bf16.mxu0 0
      %226 = vmatpush1.bf16.msra.mxu0 0
      %227 = vmatprep.subr.bf16.mxu0 0
      %228 = vmatpush1.bf16.msra.mxu0 0
      %229 = vmatprep.subr.bf16.mxu0 0
      %230 = vmatpush1.bf16.msra.mxu0 0
      %231 = vmatprep.subr.bf16.mxu0 0
      %232 = vmatpush1.bf16.msra.mxu0 0
      %233 = vmatprep.subr.bf16.mxu0 0
      %234 = vmatpush1.bf16.msra.mxu0 0
      %235 = vmatprep.subr.bf16.mxu0 0
      %236 = vmatpush1.bf16.msra.mxu0 0
      %237 = vmatprep.subr.bf16.mxu0 0
      %238 = vmatpush1.bf16.msra.mxu0 0
      %239 = vmatprep.subr.bf16.mxu0 0
      %240 = vmatpush1.bf16.msra.mxu0 0
      %241 = vmatprep.subr.bf16.mxu0 0
      %242 = vmatpush1.bf16.msra.mxu0 0
      %243 = vmatprep.subr.bf16.mxu0 0
      %244 = vmatpush1.bf16.msra.mxu0 0
      %245 = vmatprep.subr.bf16.mxu0 0
      %246 = vmatpush1.bf16.msra.mxu0 0
      %247 = vmatprep.subr.bf16.mxu0 0
      %248 = vmatpush1.bf16.msra.mxu0 0
      %249 = vmatprep.mubr.bf16.mxu0 0
      %250 = vmatmul.mubr.bf16.gmra.mrb[0].mxu0 %v212
      %v251 = vpop.f32.mrb[0].mxu0
      %v252 = vadd.f32 %v178, %v251
      %v253 = vpop.f32.mrb[0].mxu0
      %v254 = vpop.f32.mrb[0].mxu0
      %v255 = vadd.f32 %v179, %v254
      %v256 = vpop.f32.mrb[0].mxu0
      %257 = vmatprep.mubr.bf16.mxu0 0
      %258 = vmatmul.mubr.bf16.gmra.mrb[0].mxu0 %v215
      %v259 = vpop.f32.mrb[0].mxu0
      %v260 = vadd.f32 %v180, %v259
      %v261 = vpop.f32.mrb[0].mxu0
      %v262 = vpop.f32.mrb[0].mxu0
      %v263 = vpop.f32.mrb[0].mxu0
      %264 = vdwg.mxu0
      %vm265 = vcmask 261120
      %266 = vst.msk [vmem:[%s170] sm:$0xff] %vm265, %v252
      %267 = vst.msk [vmem:[%s170 + $0x8] sm:$0xff] %vm265, %v255
      %vm268 = vcmask 253952
      %269 = vst.msk [vmem:[%s170 + $0x10] sm:$0x1] %vm268, %v260
      %p270 = scmp.lt.s32.totalorder %s14, 1
      %s271 = scalar_select %p270, %s14, 1
      %s272 = smul.addr %s271, 3
      %s273 = smul.addr %s272, 8
      %s274 = scalar_lea.vmem %s3, %s273
      // Predicated region
      $region33: #{tpu_custom_call.1} parent=31 // pred_check
        %p275 = pneg %p100
      $region34: #{tpu_custom_call.1} parent=31 // pred_check_branch
        %277 = sbr.rel (%p275) target = $region36
      $region35: #{tpu_custom_call.1} parent=31 // pred_region
        _
      $region36: #{tpu_custom_call.1} parent=31 // pred_fallthru
        _
    $region32: #{tpu_custom_call.1} parent=5 // pred_fallthru
      _
    %p278 = scmp.le.s32.totalorder 2, %s9
    // Predicated region
    $region37: #{tpu_custom_call.1} parent=5 // pred_check
      %p279 = pneg %p278
    $region38: #{tpu_custom_call.1} parent=5 // pred_check_branch
      %281 = sbr.rel (%p279) target = $region40
    $region39: #{tpu_custom_call.1} parent=5 // pred_region
      %s282 = ssub.s32 %s9, 2
      // Predicated region
      $region41: #{tpu_custom_call.1} parent=39 // pred_check
        %p283 = pneg %p106
      $region42: #{tpu_custom_call.1} parent=39 // pred_check_branch
        %285 = sbr.rel (%p283) target = $region44
      $region43: #{tpu_custom_call.1} parent=39 // pred_region
        %p286 = scmp.lt.s32.totalorder %s15, 1
        %s287 = scalar_select %p286, %s15, 1
        %s288 = smul.addr %s287, 3
        %s289 = smul.addr %s288, 8
        %s290 = scalar_lea.vmem %s3, %s289
      $region44: #{tpu_custom_call.1} parent=39 // pred_fallthru
        _
    $region40: #{tpu_custom_call.1} parent=5 // pred_fallthru
      _
  $region6: #{tpu_custom_call.1} parent=0 // loop_footer
    %s13 = sadd.s32 1, %s9
  $region7: #{tpu_custom_call.1} parent=0 // loop_footer_branch
    %8 = sbr.rel target = $region3
  $region8: #{tpu_custom_call.1} parent=0 // loop_exit
    _

</llo_original>
